<compile_context>
chip_gen: v5e
topology: v5e:2x2
jax: 0.10.0
libtpu: 0.0.40
codegen_flags: <defaults>
</compile_context>

<pallas_src>
import functools

import jax
import jax.numpy as jnp
from jax.experimental import pallas as pl
from jax.experimental.pallas import tpu as pltpu


def _round_up(x, m):
    return ((x + m - 1) // m) * m


def mlp_kernel(x_ref, w1_ref, b1_ref, w2_ref, b2_ref, w3_ref, b3_ref, o_ref):
    # x / wK are bf16 (MXU-native); accumulate in f32; elementwise math stays f32.
    x = x_ref[...]
    # fc1 + ReLU
    h1 = jnp.dot(x, w1_ref[...], preferred_element_type=jnp.float32) + b1_ref[...]
    h1 = jnp.maximum(h1, 0.0)
    # fc2 + ReLU
    h2 = jnp.dot(h1.astype(jnp.bfloat16), w2_ref[...],
                 preferred_element_type=jnp.float32) + b2_ref[...]
    h2 = jnp.maximum(h2, 0.0)
    # fc3 (lane-padded to 128 output columns) + sigmoid
    z = jnp.dot(h2.astype(jnp.bfloat16), w3_ref[...],
                preferred_element_type=jnp.float32) + b3_ref[...]
    # sigmoid(z) = 1 / (1 + exp(-z)): exp -> EUP, approx reciprocal -> EUP slot.
    o_ref[...] = pl.reciprocal(1.0 + jnp.exp(-z), approx=True).astype(o_ref.dtype)


def prepare_params(w1, b1, w2, b2, w3, b3):
    """One-time prep hoisted off the per-call forward path:
      * pad fc1's K dim (d_in) up to a multiple of 16 (bf16 sublane packing),
      * pad fc3's output dim up to a multiple of 128 (lane-dense unmasked stores),
      * cast weights to bf16 (MXU-native); biases stay f32.
    Returns (prepped_param_tuple, out_dim)."""
    d_in, hidden = w1.shape
    out_dim = w3.shape[1]

    d_in_pad = _round_up(d_in, 16)
    out_pad = _round_up(out_dim, 128)

    w1p = jnp.zeros((d_in_pad, hidden), w1.dtype).at[:d_in, :].set(w1)
    w3p = jnp.zeros((hidden, out_pad), w3.dtype).at[:, :out_dim].set(w3)
    b3p = jnp.zeros((1, out_pad), b3.dtype).at[:, :out_dim].set(b3)

    prepped = (
        w1p.astype(jnp.bfloat16), b1.astype(jnp.float32),
        w2.astype(jnp.bfloat16), b2.astype(jnp.float32),
        w3p.astype(jnp.bfloat16), b3p.astype(jnp.float32),
    )
    return prepped, out_dim


@functools.partial(jax.jit, static_argnames=("out_dim", "block_b"))
def mlp_forward(x, w1b, b1, w2b, b2, w3b, b3p, *, out_dim, block_b=1024):
    """x: (B, d_in) f32. Weights already padded/cast by prepare_params()."""
    B, d_in = x.shape
    d_in_pad, hidden = w1b.shape
    out_pad = w3b.shape[1]

    # Batch tile: big slabs for large B; for small B use ceil(B/2) rounded up to 16
    # so the grid has >= 2 steps and the "parallel" batch axis can shard across both
    # v7x TensorCores (16-row multiples keep bf16 sublane packing clean).
    if B >= block_b:
        tb = block_b
    else:
        tb = max(16, _round_up((B + 1) // 2, 16))
    b_pad = _round_up(B, tb)

    # Pad batch + d_in and cast to bf16 in one small fused op per call.
    xp = jnp.zeros((b_pad, d_in_pad), jnp.bfloat16).at[:B, :d_in].set(
        x.astype(jnp.bfloat16))

    grid = (b_pad // tb,)

    flops = 2 * b_pad * (d_in_pad * hidden + hidden * hidden + hidden * out_pad)
    bytes_accessed = (
        xp.size * 2
        + (w1b.size + w2b.size + w3b.size) * 2
        + (b1.size + b2.size + b3p.size) * 4
        + b_pad * out_pad * 2  # bf16 output writeback
    )

    out = pl.pallas_call(
        mlp_kernel,
        out_shape=jax.ShapeDtypeStruct((b_pad, out_pad), jnp.bfloat16),
        grid=grid,
        in_specs=[
            pl.BlockSpec((tb, d_in_pad), lambda i: (i, 0)),     # x: tiled over batch
            pl.BlockSpec((d_in_pad, hidden), lambda i: (0, 0)),  # w1: VMEM-resident
            pl.BlockSpec((1, hidden), lambda i: (0, 0)),         # b1: VMEM-resident
            pl.BlockSpec((hidden, hidden), lambda i: (0, 0)),    # w2: VMEM-resident
            pl.BlockSpec((1, hidden), lambda i: (0, 0)),         # b2: VMEM-resident
            pl.BlockSpec((hidden, out_pad), lambda i: (0, 0)),   # w3 (padded): resident
            pl.BlockSpec((1, out_pad), lambda i: (0, 0)),        # b3 (padded): resident
        ],
        out_specs=pl.BlockSpec((tb, out_pad), lambda i: (i, 0)),
        compiler_params=pltpu.CompilerParams(
            dimension_semantics=("parallel",)),
        cost_estimate=pl.CostEstimate(
            flops=flops,
            transcendentals=2 * b_pad * out_pad,
            bytes_accessed=bytes_accessed),
    )(xp, w1b, b1, w2b, b2, w3b, b3p)

    # Strip batch padding and the zero-padded logit columns; return f32 to match the
    # reference module's output dtype (tiny (B, out_dim) cast, negligible cost).
    return out[:B, :out_dim].astype(jnp.float32)


def init_params(key, input_dim=13, hidden_dim=128, output_dim=2):
    """Deterministic init mimicking nn.Linear's U(-1/sqrt(fan_in), 1/sqrt(fan_in)).

    Weights are returned already transposed to (in, out)."""
    ks = jax.random.split(key, 6)

    def linear(kw, kb, fan_in, fan_out):
        bound = 1.0 / jnp.sqrt(fan_in)
        w = jax.random.uniform(kw, (fan_in, fan_out), jnp.float32, -bound, bound)
        b = jax.random.uniform(kb, (1, fan_out), jnp.float32, -bound, bound)
        return w, b

    w1, b1 = linear(ks[0], ks[1], input_dim, hidden_dim)
    w2, b2 = linear(ks[2], ks[3], hidden_dim, hidden_dim)
    w3, b3 = linear(ks[4], ks[5], hidden_dim, output_dim)
    return w1, b1, w2, b2, w3, b3


if __name__ == "__main__":
    INPUT_DIM = 13   # CONFIG.N_MFCC
    HIDDEN_DIM = 128
    OUTPUT_DIM = 2   # CONFIG.N_CLASSES
    BATCH = 96       # CONFIG.BATCH_SIZE

    key = jax.random.PRNGKey(0)
    k_x, k_p = jax.random.split(key)
    x = jax.random.normal(k_x, (BATCH, INPUT_DIM), dtype=jnp.float32)
    params = init_params(k_p, INPUT_DIM, HIDDEN_DIM, OUTPUT_DIM)

    # One-time weight prep (pad + bf16 cast) outside the per-call forward path.
    prepped, out_dim = prepare_params(*params)
    prepped = jax.block_until_ready(prepped)

    out = mlp_forward(x, *prepped, out_dim=out_dim)
    out = jax.block_until_ready(out)

    # Pure-JAX reference in matching precision (bf16 MXU operands, f32 accumulation).
    w1, b1, w2, b2, w3, b3 = params
    xb = x.astype(jnp.bfloat16)
    h1 = jnp.maximum(
        jnp.dot(xb, w1.astype(jnp.bfloat16), preferred_element_type=jnp.float32) + b1, 0.0)
    h2 = jnp.maximum(
        jnp.dot(h1.astype(jnp.bfloat16), w2.astype(jnp.bfloat16),
                preferred_element_type=jnp.float32) + b2, 0.0)
    z = jnp.dot(h2.astype(jnp.bfloat16), w3.astype(jnp.bfloat16),
                preferred_element_type=jnp.float32) + b3
    ref = jax.nn.sigmoid(z)

    assert out.shape == (BATCH, OUTPUT_DIM)
    # Output passed through a bf16 store + approx-EUP sigmoid; values in [0, 1].
    assert jnp.allclose(out, ref, atol=1e-2, rtol=2e-2), float(jnp.max(jnp.abs(out - ref)))

    print("KERNEL_OK")
</pallas_src>

<mosaic_0001>
module attributes {stable_mosaic.version = 11 : i64} {
  func.func @mlp_kernel(%arg0: i32, %arg1: memref<48x16xbf16, #tpu.memory_space<vmem>>, %arg2: memref<16x128xbf16, #tpu.memory_space<vmem>>, %arg3: memref<1x128xf32, #tpu.memory_space<vmem>>, %arg4: memref<128x128xbf16, #tpu.memory_space<vmem>>, %arg5: memref<1x128xf32, #tpu.memory_space<vmem>>, %arg6: memref<128x128xbf16, #tpu.memory_space<vmem>>, %arg7: memref<1x128xf32, #tpu.memory_space<vmem>>, %arg8: memref<48x128xbf16, #tpu.memory_space<vmem>>) attributes {dimension_semantics = [#tpu.dimension_semantics<parallel>], iteration_bounds = array<i64: 2>, scalar_prefetch = 0 : i64, scratch_operands = 0 : i64, tpu.core_type = #tpu.core_type<tc>, window_params = [{transform_indices = @transform_0, window_bounds = array<i64: 48, 16>}, {pipeline_mode = #tpu.pipeline_mode<synchronous>, transform_indices = @transform_1, window_bounds = array<i64: 16, 128>}, {pipeline_mode = #tpu.pipeline_mode<synchronous>, transform_indices = @transform_2, window_bounds = array<i64: 1, 128>}, {pipeline_mode = #tpu.pipeline_mode<synchronous>, transform_indices = @transform_3, window_bounds = array<i64: 128, 128>}, {pipeline_mode = #tpu.pipeline_mode<synchronous>, transform_indices = @transform_4, window_bounds = array<i64: 1, 128>}, {pipeline_mode = #tpu.pipeline_mode<synchronous>, transform_indices = @transform_5, window_bounds = array<i64: 128, 128>}, {pipeline_mode = #tpu.pipeline_mode<synchronous>, transform_indices = @transform_6, window_bounds = array<i64: 1, 128>}, {transform_indices = @transform_7, window_bounds = array<i64: 48, 128>}]} {
    %c0 = arith.constant 0 : index
    %c0_0 = arith.constant 0 : index
    %0 = vector.load %arg1[%c0, %c0_0] : memref<48x16xbf16, #tpu.memory_space<vmem>>, vector<48x16xbf16>
    %c0_1 = arith.constant 0 : index
    %c0_2 = arith.constant 0 : index
    %1 = vector.load %arg2[%c0_1, %c0_2] : memref<16x128xbf16, #tpu.memory_space<vmem>>, vector<16x128xbf16>
    %cst = arith.constant dense<0.000000e+00> : vector<48x128xf32>
    %2 = tpu.matmul %0, %1, %cst {dimension_numbers = #tpu.dot_dimension_numbers<[1], [0], [0], [1], [0, 0, 1, 1], [], []>} : vector<48x16xbf16>, vector<16x128xbf16>, vector<48x128xf32> -> vector<48x128xf32>
    %c0_3 = arith.constant 0 : index
    %c0_4 = arith.constant 0 : index
    %3 = vector.load %arg3[%c0_3, %c0_4] : memref<1x128xf32, #tpu.memory_space<vmem>>, vector<1x128xf32>
    %4 = vector.broadcast %3 : vector<1x128xf32> to vector<48x128xf32>
    %5 = arith.addf %2, %4 : vector<48x128xf32>
    %cst_5 = arith.constant 0.000000e+00 : f32
    %6 = vector.broadcast %cst_5 : f32 to vector<48x128xf32>
    %7 = arith.maximumf %5, %6 : vector<48x128xf32>
    %8 = arith.truncf %7 : vector<48x128xf32> to vector<48x128xbf16>
    %c0_6 = arith.constant 0 : index
    %c0_7 = arith.constant 0 : index
    %9 = vector.load %arg4[%c0_6, %c0_7] : memref<128x128xbf16, #tpu.memory_space<vmem>>, vector<128x128xbf16>
    %cst_8 = arith.constant dense<0.000000e+00> : vector<48x128xf32>
    %10 = tpu.matmul %8, %9, %cst_8 {dimension_numbers = #tpu.dot_dimension_numbers<[1], [0], [0], [1], [0, 0, 1, 1], [], []>} : vector<48x128xbf16>, vector<128x128xbf16>, vector<48x128xf32> -> vector<48x128xf32>
    %c0_9 = arith.constant 0 : index
    %c0_10 = arith.constant 0 : index
    %11 = vector.load %arg5[%c0_9, %c0_10] : memref<1x128xf32, #tpu.memory_space<vmem>>, vector<1x128xf32>
    %12 = vector.broadcast %11 : vector<1x128xf32> to vector<48x128xf32>
    %13 = arith.addf %10, %12 : vector<48x128xf32>
    %cst_11 = arith.constant 0.000000e+00 : f32
    %14 = vector.broadcast %cst_11 : f32 to vector<48x128xf32>
    %15 = arith.maximumf %13, %14 : vector<48x128xf32>
    %16 = arith.truncf %15 : vector<48x128xf32> to vector<48x128xbf16>
    %c0_12 = arith.constant 0 : index
    %c0_13 = arith.constant 0 : index
    %17 = vector.load %arg6[%c0_12, %c0_13] : memref<128x128xbf16, #tpu.memory_space<vmem>>, vector<128x128xbf16>
    %cst_14 = arith.constant dense<0.000000e+00> : vector<48x128xf32>
    %18 = tpu.matmul %16, %17, %cst_14 {dimension_numbers = #tpu.dot_dimension_numbers<[1], [0], [0], [1], [0, 0, 1, 1], [], []>} : vector<48x128xbf16>, vector<128x128xbf16>, vector<48x128xf32> -> vector<48x128xf32>
    %c0_15 = arith.constant 0 : index
    %c0_16 = arith.constant 0 : index
    %19 = vector.load %arg7[%c0_15, %c0_16] : memref<1x128xf32, #tpu.memory_space<vmem>>, vector<1x128xf32>
    %20 = vector.broadcast %19 : vector<1x128xf32> to vector<48x128xf32>
    %21 = arith.addf %18, %20 : vector<48x128xf32>
    %cst_17 = arith.constant 0.000000e+00 : f32
    %22 = vector.broadcast %cst_17 : f32 to vector<48x128xf32>
    %23 = arith.subf %22, %21 : vector<48x128xf32>
    %24 = math.exp %23 : vector<48x128xf32>
    %cst_18 = arith.constant 1.000000e+00 : f32
    %25 = vector.broadcast %cst_18 : f32 to vector<48x128xf32>
    %26 = arith.addf %25, %24 : vector<48x128xf32>
    %27 = tpu.reciprocal %26 {approx = true} : vector<48x128xf32> -> vector<48x128xf32>
    %28 = arith.truncf %27 : vector<48x128xf32> to vector<48x128xbf16>
    %c0_19 = arith.constant 0 : index
    %c0_20 = arith.constant 0 : index
    %29 = vector.load %arg8[%c0_19, %c0_20] : memref<48x128xbf16, #tpu.memory_space<vmem>>, vector<48x128xbf16>
    tpu.vector_store %arg8[%c0_19, %c0_20], %28 {strides = array<i32>} : memref<48x128xbf16, #tpu.memory_space<vmem>>, vector<48x128xbf16>,
    return
  }
  func.func @transform_0(%arg0: i32) -> (i32, i32) {
    %c0_i32 = arith.constant 0 : i32
    %c0_i32_0 = arith.constant 0 : i32
    return %arg0, %c0_i32 : i32, i32
  }
  func.func @transform_1(%arg0: i32) -> (i32, i32) {
    %c0_i32 = arith.constant 0 : i32
    %c0_i32_0 = arith.constant 0 : i32
    %c0_i32_1 = arith.constant 0 : i32
    return %c0_i32, %c0_i32_0 : i32, i32
  }
  func.func @transform_2(%arg0: i32) -> (i32, i32) {
    %c0_i32 = arith.constant 0 : i32
    %c0_i32_0 = arith.constant 0 : i32
    %c0_i32_1 = arith.constant 0 : i32
    return %c0_i32, %c0_i32_0 : i32, i32
  }
  func.func @transform_3(%arg0: i32) -> (i32, i32) {
    %c0_i32 = arith.constant 0 : i32
    %c0_i32_0 = arith.constant 0 : i32
    %c0_i32_1 = arith.constant 0 : i32
    return %c0_i32, %c0_i32_0 : i32, i32
  }
  func.func @transform_4(%arg0: i32) -> (i32, i32) {
    %c0_i32 = arith.constant 0 : i32
    %c0_i32_0 = arith.constant 0 : i32
    %c0_i32_1 = arith.constant 0 : i32
    return %c0_i32, %c0_i32_0 : i32, i32
  }
  func.func @transform_5(%arg0: i32) -> (i32, i32) {
    %c0_i32 = arith.constant 0 : i32
    %c0_i32_0 = arith.constant 0 : i32
    %c0_i32_1 = arith.constant 0 : i32
    return %c0_i32, %c0_i32_0 : i32, i32
  }
  func.func @transform_6(%arg0: i32) -> (i32, i32) {
    %c0_i32 = arith.constant 0 : i32
    %c0_i32_0 = arith.constant 0 : i32
    %c0_i32_1 = arith.constant 0 : i32
    return %c0_i32, %c0_i32_0 : i32, i32
  }
  func.func @transform_7(%arg0: i32) -> (i32, i32) {
    %c0_i32 = arith.constant 0 : i32
    %c0_i32_0 = arith.constant 0 : i32
    return %arg0, %c0_i32 : i32, i32
  }
}

</mosaic_0001>

<llo_original>
// kernel: mlp_forward.1
$region0: #{mlp_forward.1}
  #allocation0 [shape = 'u32[]', space=smem, size = 0x4, offset = 0x4, fixed_abs, tag = 'smem constant byte address 0x4 - core index']
  #allocation1 [shape = 'u32[72,128]{1,0:T(1,128)}', space=vmem, size = 0x9000, scoped, tag = 'internal scratch']
  %s0 = inlined_call_operand.vmem [shape: bf16[96,16], index: 0, kind: input, shape index: {}]
  %s1 = inlined_call_operand.vmem [shape: bf16[16,128], index: 1, kind: input, shape index: {}]
  %s2 = inlined_call_operand.vmem [shape: f32[1,128], index: 2, kind: input, shape index: {}]
  %s3 = inlined_call_operand.vmem [shape: bf16[128,128], index: 3, kind: input, shape index: {}]
  %s4 = inlined_call_operand.vmem [shape: f32[1,128], index: 4, kind: input, shape index: {}]
  %s5 = inlined_call_operand.vmem [shape: bf16[128,128], index: 5, kind: input, shape index: {}]
  %s6 = inlined_call_operand.vmem [shape: f32[1,128], index: 6, kind: input, shape index: {}]
  %s7 = inlined_call_operand.vmem [shape: bf16[96,128], index: 7, kind: output, shape index: {}]
  %s8 = sld [smem:[#allocation0]]
  $region61: #{mlp_forward.1} parent=0
    _
  %s10 = ssub.s32 1, %s8
  %s11 = scalar_select 0, %s10, %s8
  loop: start=0, step=1, limit=4
  $region2: #{mlp_forward.1} parent=0 // loop_pre_header
    _
  $region3: #{mlp_forward.1} parent=0 // loop_header
    %s13 = sphi 0, %s17
    %p14 = scmp.ge.s32.totalorder %s13, 4
    %s23 = sphi 0, %s25
    %s26 = sphi 0, %s23
    %s27 = sphi 0, %s26
    %s43 = sphi 0, %s27
    %s47 = sphi 0, %s47
    %s49 = sphi 0, %s47
    %s50 = sphi 0, %s49
    %s64 = sphi 0, %s50
    %s68 = sphi 0, %s68
    %s70 = sphi 0, %s68
    %s71 = sphi 0, %s70
    %s85 = sphi 0, %s71
    %s89 = sphi 0, %s89
    %s91 = sphi 0, %s89
    %s92 = sphi 0, %s91
    %s106 = sphi 0, %s92
    %s110 = sphi 0, %s110
    %s112 = sphi 0, %s110
    %s113 = sphi 0, %s112
    %s127 = sphi 0, %s113
    %s131 = sphi 0, %s131
    %s133 = sphi 0, %s131
    %s134 = sphi 0, %s133
    %s148 = sphi 0, %s134
    %s152 = sphi 0, %s152
    %s154 = sphi 0, %s152
    %s155 = sphi 0, %s154
    %s169 = sphi 0, %s155
    %s175 = sphi 0, %s177
    %s178 = sphi 0, %s175
    %s179 = sphi 0, %s178
    %s195 = sphi 0, %s179
  $region4: #{mlp_forward.1} parent=0 // loop_header_branch
    %16 = sbr.rel (%p14) target = $region8
  $region5: #{mlp_forward.1} parent=0 // loop_body
    %s18 = ssub.s32 %s13, 1
    %s19 = ssub.s32 %s13, 2
    %s20 = sadd.s32 %s13, 1
    %s21 = ssub.s32 %s13, %s20
    %p22 = scmp.eq.s32.totalorder %s21, 0
    %s24 = sadd.s32 %s23, 1
    %s25 = scalar_select %p22, %s23, %s24
    %p28 = pneg %p22
    %p29 = scmp.eq.s32.totalorder %s13, 1
    %p30 = por %p28, %p29
    %p31 = scmp.ne.s32.totalorder %s23, %s26
    %p32 = scmp.eq.s32.totalorder %s13, 0
    %p33 = por %p31, %p32
    %p34 = scmp.ne.s32.totalorder %s23, %s26
    %p35 = scmp.eq.s32.totalorder %s18, 1
    %p36 = por %p34, %p35
    %p37 = scmp.ne.s32.totalorder %s26, %s27
    %p38 = scmp.eq.s32.totalorder %s18, 0
    %p39 = por %p37, %p38
    %p40 = scmp.ne.s32.totalorder %s26, %s27
    %p41 = scmp.eq.s32.totalorder %s19, 1
    %p42 = por %p40, %p41
    %p44 = scmp.ne.s32.totalorder %s27, %s43
    %p45 = scmp.eq.s32.totalorder %s19, 0
    %p46 = por %p44, %p45
    %s48 = sadd.s32 %s47, 1
    %p51 = scmp.eq.s32.totalorder %s13, 1
    %p52 = scmp.ne.s32.totalorder %s47, %s49
    %p53 = scmp.eq.s32.totalorder %s13, 0
    %p54 = por %p52, %p53
    %p55 = scmp.ne.s32.totalorder %s47, %s49
    %p56 = scmp.eq.s32.totalorder %s18, 1
    %p57 = por %p55, %p56
    %p58 = scmp.ne.s32.totalorder %s49, %s50
    %p59 = scmp.eq.s32.totalorder %s18, 0
    %p60 = por %p58, %p59
    %p61 = scmp.ne.s32.totalorder %s49, %s50
    %p62 = scmp.eq.s32.totalorder %s19, 1
    %p63 = por %p61, %p62
    %p65 = scmp.ne.s32.totalorder %s50, %s64
    %p66 = scmp.eq.s32.totalorder %s19, 0
    %p67 = por %p65, %p66
    %s69 = sadd.s32 %s68, 1
    %p72 = scmp.eq.s32.totalorder %s13, 1
    %p73 = scmp.ne.s32.totalorder %s68, %s70
    %p74 = scmp.eq.s32.totalorder %s13, 0
    %p75 = por %p73, %p74
    %p76 = scmp.ne.s32.totalorder %s68, %s70
    %p77 = scmp.eq.s32.totalorder %s18, 1
    %p78 = por %p76, %p77
    %p79 = scmp.ne.s32.totalorder %s70, %s71
    %p80 = scmp.eq.s32.totalorder %s18, 0
    %p81 = por %p79, %p80
    %p82 = scmp.ne.s32.totalorder %s70, %s71
    %p83 = scmp.eq.s32.totalorder %s19, 1
    %p84 = por %p82, %p83
    %p86 = scmp.ne.s32.totalorder %s71, %s85
    %p87 = scmp.eq.s32.totalorder %s19, 0
    %p88 = por %p86, %p87
    %s90 = sadd.s32 %s89, 1
    %p93 = scmp.eq.s32.totalorder %s13, 1
    %p94 = scmp.ne.s32.totalorder %s89, %s91
    %p95 = scmp.eq.s32.totalorder %s13, 0
    %p96 = por %p94, %p95
    %p97 = scmp.ne.s32.totalorder %s89, %s91
    %p98 = scmp.eq.s32.totalorder %s18, 1
    %p99 = por %p97, %p98
    %p100 = scmp.ne.s32.totalorder %s91, %s92
    %p101 = scmp.eq.s32.totalorder %s18, 0
    %p102 = por %p100, %p101
    %p103 = scmp.ne.s32.totalorder %s91, %s92
    %p104 = scmp.eq.s32.totalorder %s19, 1
    %p105 = por %p103, %p104
    %p107 = scmp.ne.s32.totalorder %s92, %s106
    %p108 = scmp.eq.s32.totalorder %s19, 0
    %p109 = por %p107, %p108
    %s111 = sadd.s32 %s110, 1
    %p114 = scmp.eq.s32.totalorder %s13, 1
    %p115 = scmp.ne.s32.totalorder %s110, %s112
    %p116 = scmp.eq.s32.totalorder %s13, 0
    %p117 = por %p115, %p116
    %p118 = scmp.ne.s32.totalorder %s110, %s112
    %p119 = scmp.eq.s32.totalorder %s18, 1
    %p120 = por %p118, %p119
    %p121 = scmp.ne.s32.totalorder %s112, %s113
    %p122 = scmp.eq.s32.totalorder %s18, 0
    %p123 = por %p121, %p122
    %p124 = scmp.ne.s32.totalorder %s112, %s113
    %p125 = scmp.eq.s32.totalorder %s19, 1
    %p126 = por %p124, %p125
    %p128 = scmp.ne.s32.totalorder %s113, %s127
    %p129 = scmp.eq.s32.totalorder %s19, 0
    %p130 = por %p128, %p129
    %s132 = sadd.s32 %s131, 1
    %p135 = scmp.eq.s32.totalorder %s13, 1
    %p136 = scmp.ne.s32.totalorder %s131, %s133
    %p137 = scmp.eq.s32.totalorder %s13, 0
    %p138 = por %p136, %p137
    %p139 = scmp.ne.s32.totalorder %s131, %s133
    %p140 = scmp.eq.s32.totalorder %s18, 1
    %p141 = por %p139, %p140
    %p142 = scmp.ne.s32.totalorder %s133, %s134
    %p143 = scmp.eq.s32.totalorder %s18, 0
    %p144 = por %p142, %p143
    %p145 = scmp.ne.s32.totalorder %s133, %s134
    %p146 = scmp.eq.s32.totalorder %s19, 1
    %p147 = por %p145, %p146
    %p149 = scmp.ne.s32.totalorder %s134, %s148
    %p150 = scmp.eq.s32.totalorder %s19, 0
    %p151 = por %p149, %p150
    %s153 = sadd.s32 %s152, 1
    %p156 = scmp.eq.s32.totalorder %s13, 1
    %p157 = scmp.ne.s32.totalorder %s152, %s154
    %p158 = scmp.eq.s32.totalorder %s13, 0
    %p159 = por %p157, %p158
    %p160 = scmp.ne.s32.totalorder %s152, %s154
    %p161 = scmp.eq.s32.totalorder %s18, 1
    %p162 = por %p160, %p161
    %p163 = scmp.ne.s32.totalorder %s154, %s155
    %p164 = scmp.eq.s32.totalorder %s18, 0
    %p165 = por %p163, %p164
    %p166 = scmp.ne.s32.totalorder %s154, %s155
    %p167 = scmp.eq.s32.totalorder %s19, 1
    %p168 = por %p166, %p167
    %p170 = scmp.ne.s32.totalorder %s155, %s169
    %p171 = scmp.eq.s32.totalorder %s19, 0
    %p172 = por %p170, %p171
    %s173 = ssub.s32 %s13, %s20
    %p174 = scmp.eq.s32.totalorder %s173, 0
    %s176 = sadd.s32 %s175, 1
    %s177 = scalar_select %p174, %s175, %s176
    %p180 = pneg %p174
    %p181 = scmp.eq.s32.totalorder %s13, 1
    %p182 = por %p180, %p181
    %p183 = scmp.ne.s32.totalorder %s175, %s178
    %p184 = scmp.eq.s32.totalorder %s13, 0
    %p185 = por %p183, %p184
    %p186 = scmp.ne.s32.totalorder %s175, %s178
    %p187 = scmp.eq.s32.totalorder %s18, 1
    %p188 = por %p186, %p187
    %p189 = scmp.ne.s32.totalorder %s178, %s179
    %p190 = scmp.eq.s32.totalorder %s18, 0
    %p191 = por %p189, %p190
    %p192 = scmp.ne.s32.totalorder %s178, %s179
    %p193 = scmp.eq.s32.totalorder %s19, 1
    %p194 = por %p192, %p193
    %p196 = scmp.ne.s32.totalorder %s179, %s195
    %p197 = scmp.eq.s32.totalorder %s19, 0
    %p198 = por %p196, %p197
    %p199 = scmp.le.s32.totalorder 1, %s13
    %p200 = scmp.lt.s32.totalorder %s13, 3
    %p201 = pnand %p199, %p200
    %p202 = pneg %p201
    // Predicated region
    $region9: #{mlp_forward.1} parent=5 // pred_check
      _
    $region10: #{mlp_forward.1} parent=5 // pred_check_branch
      %204 = sbr.rel (%p201) target = $region12
    $region11: #{mlp_forward.1} parent=5 // pred_region
      %s205 = ssub.s32 %s13, 1
      // Predicated region
      $region13: #{mlp_forward.1} parent=11 // pred_check
        %p206 = pneg %p60
      $region14: #{mlp_forward.1} parent=11 // pred_check_branch
        %208 = sbr.rel (%p206) target = $region16
      $region15: #{mlp_forward.1} parent=11 // pred_region
        _
      $region16: #{mlp_forward.1} parent=11 // pred_fallthru
        _
      // Predicated region
      $region17: #{mlp_forward.1} parent=11 // pred_check
        %p209 = pneg %p81
      $region18: #{mlp_forward.1} parent=11 // pred_check_branch
        %211 = sbr.rel (%p209) target = $region20
      $region19: #{mlp_forward.1} parent=11 // pred_region
        _
      $region20: #{mlp_forward.1} parent=11 // pred_fallthru
        _
      // Predicated region
      $region21: #{mlp_forward.1} parent=11 // pred_check
        %p212 = pneg %p102
      $region22: #{mlp_forward.1} parent=11 // pred_check_branch
        %214 = sbr.rel (%p212) target = $region24
      $region23: #{mlp_forward.1} parent=11 // pred_region
        _
      $region24: #{mlp_forward.1} parent=11 // pred_fallthru
        _
      // Predicated region
      $region25: #{mlp_forward.1} parent=11 // pred_check
        %p215 = pneg %p123
      $region26: #{mlp_forward.1} parent=11 // pred_check_branch
        %217 = sbr.rel (%p215) target = $region28
      $region27: #{mlp_forward.1} parent=11 // pred_region
        _
      $region28: #{mlp_forward.1} parent=11 // pred_fallthru
        _
      // Predicated region
      $region29: #{mlp_forward.1} parent=11 // pred_check
        %p218 = pneg %p144
      $region30: #{mlp_forward.1} parent=11 // pred_check_branch
        %220 = sbr.rel (%p218) target = $region32
      $region31: #{mlp_forward.1} parent=11 // pred_region
        _
      $region32: #{mlp_forward.1} parent=11 // pred_fallthru
        _
      // Predicated region
      $region33: #{mlp_forward.1} parent=11 // pred_check
        %p221 = pneg %p165
      $region34: #{mlp_forward.1} parent=11 // pred_check_branch
        %223 = sbr.rel (%p221) target = $region36
      $region35: #{mlp_forward.1} parent=11 // pred_region
        _
      $region36: #{mlp_forward.1} parent=11 // pred_fallthru
        _
    $region12: #{mlp_forward.1} parent=5 // pred_fallthru
      _
    %p224 = scmp.lt.s32.totalorder %s13, 2
    // Predicated region
    $region37: #{mlp_forward.1} parent=5 // pred_check
      %p225 = pneg %p224
    $region38: #{mlp_forward.1} parent=5 // pred_check_branch
      %227 = sbr.rel (%p225) target = $region40
    $region39: #{mlp_forward.1} parent=5 // pred_region
      // Predicated region
      $region41: #{mlp_forward.1} parent=39 // pred_check
        %p228 = pneg %p33
      $region42: #{mlp_forward.1} parent=39 // pred_check_branch
        %230 = sbr.rel (%p228) target = $region44
      $region43: #{mlp_forward.1} parent=39 // pred_region
        %s231 = smul.u32 6, %s13
        %p232 = scmp.lt.s32.totalorder %s231, 11
        %s233 = scalar_select %p232, %s231, 11
        %s234 = smul.addr %s233, 4
        %s235 = scalar_lea.vmem %s0, %s234
        %s236 = smul.u32 6, %s13
      $region44: #{mlp_forward.1} parent=39 // pred_fallthru
        _
    $region40: #{mlp_forward.1} parent=5 // pred_fallthru
      _
    %p237 = scmp.le.s32.totalorder 1, %s13
    %p238 = scmp.lt.s32.totalorder %s13, 3
    %p239 = pnand %p237, %p238
    %p240 = pneg %p239
    // Predicated region
    $region45: #{mlp_forward.1} parent=5 // pred_check
      _
    $region46: #{mlp_forward.1} parent=5 // pred_check_branch
      %242 = sbr.rel (%p239) target = $region48
    $region47: #{mlp_forward.1} parent=5 // pred_region
      %s243 = ssub.s32 %s13, 1
      %s244 = smul.u32 6, %s18
      %p245 = scmp.lt.s32.totalorder %s244, 11
      %s246 = scalar_select %p245, %s244, 11
      %s247 = smul.addr %s246, 4
      %s248 = scalar_lea.vmem %s0, %s247
      %p249 = pneg %p39
      %p250 = pneg %p36
      %p251 = pneg %p60
      %p252 = pneg %p57
      %p253 = pneg %p81
      %p254 = pneg %p78
      %p255 = pneg %p102
      %p256 = pneg %p99
      %p257 = pneg %p123
      %p258 = pneg %p120
      %p259 = pneg %p144
      %p260 = pneg %p141
      %p261 = pneg %p165
      %p262 = pneg %p162
      %p263 = pneg %p191
      %p264 = pneg %p188
      %s265 = smul.u32 6, %s18
      %p266 = scmp.lt.s32.totalorder %s265, 11
      %s267 = scalar_select %p266, %s265, 11
      %s268 = smul.addr %s267, 4
      %s269 = scalar_lea.vmem %s7, %s268
      %s270 = smul.u32 6, %s18
      %p271 = scmp.lt.s32.totalorder %s270, 11
      %s272 = scalar_select %p271, %s270, 11
      %s273 = smul.addr %s272, 4
      %s274 = scalar_lea.vmem %s0, %s273
      %s275 = smul.u32 6, %s18
      %s276 = smul.u32 6, %s18
      %p277 = scmp.lt.s32.totalorder %s276, 11
      %s278 = scalar_select %p277, %s276, 11
      %s279 = smul.addr %s278, 4
      %s280 = scalar_lea.vmem %s7, %s279
      %s281 = smul.u32 6, %s18
      %v283 = vld [vmem:[%s274] sm:$0xf]
      %v284 = vld [vmem:[%s274 + $0x4] sm:$0xf]
      %v285 = vld [vmem:[%s274 + $0x8] sm:$0xf]
      %v286 = vld [vmem:[%s274 + $0xc] sm:$0xf]
      %v287 = vld [vmem:[%s274 + $0x10] sm:$0xf]
      %v288 = vld [vmem:[%s274 + $0x14] sm:$0xf]
      %v289 = vld [vmem:[%s1] sm:$0xf]
      %v290 = vld [vmem:[%s1 + $0x4] sm:$0xf]
      %v291 = vld [vmem:[%s2] sm:$0x1]
      %v293 = vperm.slane %v291, 0
      %v301 = vunpack.c.l.b16 %v283
      %v302 = vunpack.c.l.b16 %v284
      %v303 = vunpack.c.l.b16 %v285
      %v304 = vunpack.c.l.b16 %v286
      %v305 = vunpack.c.l.b16 %v287
      %v306 = vunpack.c.l.b16 %v288
      %v307 = vpack.c.b16 %v302, %v301
      %v308 = vpack.c.b16 %v304, %v303
      %v309 = vpack.c.b16 %v306, %v305
      %v312 = vunpack.c.l.b16 %v289
      %v313 = vunpack.c.l.b16 %v290
      %v314 = vpack.c.b16 %v313, %v312
      %vm316 = vcmask 130048
      %v318 = vsel %vm316, %v307, 0
      %v321 = vsel %vm316, %v308, 0
      %v324 = vsel %vm316, %v309, 0
      %326 = vmatpush.bf16.msra.mxu0 0
      %327 = vmatpush.bf16.msra.mxu0 0
      %328 = vmatpush.bf16.msra.mxu0 0
      %329 = vmatpush.bf16.msra.mxu0 0
      %330 = vmatpush.bf16.msra.mxu0 0
      %331 = vmatpush.bf16.msra.mxu0 0
      %332 = vmatpush.bf16.msra.mxu0 0
      %333 = vmatpush.bf16.msra.mxu0 %v314
      %334 = vmatmul.bf16.gmra.mxu0 %v318
      %v335 = vpop.f32.mrf.mxu0
      %v336 = vadd.f32 %v293, %v335
      %v337 = vpop.f32.mrf.mxu0
      %v338 = vadd.f32 %v293, %v337
      %339 = vmatmul.bf16.gmra.mxu0 %v321
      %v340 = vpop.f32.mrf.mxu0
      %v341 = vadd.f32 %v293, %v340
      %v342 = vpop.f32.mrf.mxu0
      %v343 = vadd.f32 %v293, %v342
      %344 = vmatmul.bf16.gmra.mxu0 %v324
      %v345 = vpop.f32.mrf.mxu0
      %v346 = vadd.f32 %v293, %v345
      %v347 = vpop.f32.mrf.mxu0
      %v348 = vadd.f32 %v293, %v347
      %349 = vdwg.mxu0
      %v350 = vmax.f32 %v336, 0.0
      %v351 = vmax.f32 %v338, 0.0
      %v352 = vmax.f32 %v341, 0.0
      %v353 = vmax.f32 %v343, 0.0
      %v354 = vmax.f32 %v346, 0.0
      %v355 = vmax.f32 %v348, 0.0
      %v356 = vpack.c.bf16 %v351, %v350
      %v357 = vpack.c.bf16 %v353, %v352
      %v358 = vpack.c.bf16 %v355, %v354
      %v359 = vld [vmem:[%s3] sm:$0xf]
      %v360 = vld [vmem:[%s3 + $0x4] sm:$0xf]
      %v361 = vld [vmem:[%s3 + $0x8] sm:$0xf]
      %v362 = vld [vmem:[%s3 + $0xc] sm:$0xf]
      %v363 = vld [vmem:[%s3 + $0x10] sm:$0xf]
      %v364 = vld [vmem:[%s3 + $0x14] sm:$0xf]
      %v365 = vld [vmem:[%s3 + $0x18] sm:$0xf]
      %v366 = vld [vmem:[%s3 + $0x1c] sm:$0xf]
      %v367 = vld [vmem:[%s3 + $0x20] sm:$0xf]
      %v368 = vld [vmem:[%s3 + $0x24] sm:$0xf]
      %v369 = vld [vmem:[%s3 + $0x28] sm:$0xf]
      %v370 = vld [vmem:[%s3 + $0x2c] sm:$0xf]
      %v371 = vld [vmem:[%s3 + $0x30] sm:$0xf]
      %v372 = vld [vmem:[%s3 + $0x34] sm:$0xf]
      %v373 = vld [vmem:[%s3 + $0x38] sm:$0xf]
      %v374 = vld [vmem:[%s3 + $0x3c] sm:$0xf]
      %v375 = vld [vmem:[%s4] sm:$0x1]
      %v377 = vperm.slane %v375, 0
      %v395 = vunpack.c.l.b16 %v359
      %v396 = vunpack.c.l.b16 %v360
      %v397 = vunpack.c.l.b16 %v361
      %v398 = vunpack.c.l.b16 %v362
      %v399 = vunpack.c.l.b16 %v363
      %v400 = vunpack.c.l.b16 %v364
      %v401 = vunpack.c.l.b16 %v365
      %v402 = vunpack.c.l.b16 %v366
      %v403 = vunpack.c.l.b16 %v367
      %v404 = vunpack.c.l.b16 %v368
      %v405 = vunpack.c.l.b16 %v369
      %v406 = vunpack.c.l.b16 %v370
      %v407 = vunpack.c.l.b16 %v371
      %v408 = vunpack.c.l.b16 %v372
      %v409 = vunpack.c.l.b16 %v373
      %v410 = vunpack.c.l.b16 %v374
      %v411 = vpack.c.b16 %v396, %v395
      %v412 = vpack.c.b16 %v398, %v397
      %v413 = vpack.c.b16 %v400, %v399
      %v414 = vpack.c.b16 %v402, %v401
      %v415 = vpack.c.b16 %v404, %v403
      %v416 = vpack.c.b16 %v406, %v405
      %v417 = vpack.c.b16 %v408, %v407
      %v418 = vpack.c.b16 %v410, %v409
      %427 = vmatpush.bf16.msra.mxu0 %v418
      %428 = vmatpush.bf16.msra.mxu0 %v417
      %429 = vmatpush.bf16.msra.mxu0 %v416
      %430 = vmatpush.bf16.msra.mxu0 %v415
      %431 = vmatpush.bf16.msra.mxu0 %v414
      %432 = vmatpush.bf16.msra.mxu0 %v413
      %433 = vmatpush.bf16.msra.mxu0 %v412
      %434 = vmatpush.bf16.msra.mxu0 %v411
      %435 = vmatmul.bf16.gmra.mxu0 %v356
      %v436 = vpop.f32.mrf.mxu0
      %v437 = vadd.f32 %v377, %v436
      %v438 = vpop.f32.mrf.mxu0
      %v439 = vadd.f32 %v377, %v438
      %440 = vmatmul.bf16.gmra.mxu0 %v357
      %v441 = vpop.f32.mrf.mxu0
      %v442 = vadd.f32 %v377, %v441
      %v443 = vpop.f32.mrf.mxu0
      %v444 = vadd.f32 %v377, %v443
      %445 = vmatmul.bf16.gmra.mxu0 %v358
      %v446 = vpop.f32.mrf.mxu0
      %v447 = vadd.f32 %v377, %v446
      %v448 = vpop.f32.mrf.mxu0
      %v449 = vadd.f32 %v377, %v448
      %450 = vdwg.mxu0
      %v451 = vmax.f32 %v437, 0.0
      %v452 = vmax.f32 %v439, 0.0
      %v453 = vmax.f32 %v442, 0.0
      %v454 = vmax.f32 %v444, 0.0
      %v455 = vmax.f32 %v447, 0.0
      %v456 = vmax.f32 %v449, 0.0
      %v457 = vpack.c.bf16 %v452, %v451
      %v458 = vpack.c.bf16 %v454, %v453
      %v459 = vpack.c.bf16 %v456, %v455
      %v460 = vld [vmem:[%s5] sm:$0xf]
      %v461 = vld [vmem:[%s5 + $0x4] sm:$0xf]
      %v462 = vld [vmem:[%s5 + $0x8] sm:$0xf]
      %v463 = vld [vmem:[%s5 + $0xc] sm:$0xf]
      %v464 = vld [vmem:[%s5 + $0x10] sm:$0xf]
      %v465 = vld [vmem:[%s5 + $0x14] sm:$0xf]
      %v466 = vld [vmem:[%s5 + $0x18] sm:$0xf]
      %v467 = vld [vmem:[%s5 + $0x1c] sm:$0xf]
      %v468 = vld [vmem:[%s5 + $0x20] sm:$0xf]
      %v469 = vld [vmem:[%s5 + $0x24] sm:$0xf]
      %v470 = vld [vmem:[%s5 + $0x28] sm:$0xf]
      %v471 = vld [vmem:[%s5 + $0x2c] sm:$0xf]
      %v472 = vld [vmem:[%s5 + $0x30] sm:$0xf]
      %v473 = vld [vmem:[%s5 + $0x34] sm:$0xf]
      %v474 = vld [vmem:[%s5 + $0x38] sm:$0xf]
      %v475 = vld [vmem:[%s5 + $0x3c] sm:$0xf]
      %v476 = vld [vmem:[%s6] sm:$0x1]
      %v478 = vperm.slane %v476, 0
      %v496 = vunpack.c.l.b16 %v460
      %v497 = vunpack.c.l.b16 %v461
      %v498 = vunpack.c.l.b16 %v462
      %v499 = vunpack.c.l.b16 %v463
      %v500 = vunpack.c.l.b16 %v464
      %v501 = vunpack.c.l.b16 %v465
      %v502 = vunpack.c.l.b16 %v466
      %v503 = vunpack.c.l.b16 %v467
      %v504 = vunpack.c.l.b16 %v468
      %v505 = vunpack.c.l.b16 %v469
      %v506 = vunpack.c.l.b16 %v470
      %v507 = vunpack.c.l.b16 %v471
      %v508 = vunpack.c.l.b16 %v472
      %v509 = vunpack.c.l.b16 %v473
      %v510 = vunpack.c.l.b16 %v474
      %v511 = vunpack.c.l.b16 %v475
      %v512 = vpack.c.b16 %v497, %v496
      %v513 = vpack.c.b16 %v499, %v498
      %v514 = vpack.c.b16 %v501, %v500
      %v515 = vpack.c.b16 %v503, %v502
      %v516 = vpack.c.b16 %v505, %v504
      %v517 = vpack.c.b16 %v507, %v506
      %v518 = vpack.c.b16 %v509, %v508
      %v519 = vpack.c.b16 %v511, %v510
      %528 = vmatpush.bf16.msra.mxu0 %v519
      %529 = vmatpush.bf16.msra.mxu0 %v518
      %530 = vmatpush.bf16.msra.mxu0 %v517
      %531 = vmatpush.bf16.msra.mxu0 %v516
      %532 = vmatpush.bf16.msra.mxu0 %v515
      %533 = vmatpush.bf16.msra.mxu0 %v514
      %534 = vmatpush.bf16.msra.mxu0 %v513
      %535 = vmatpush.bf16.msra.mxu0 %v512
      %536 = vmatmul.bf16.gmra.mxu0 %v457
      %v537 = vpop.f32.mrf.mxu0
      %v538 = vadd.f32 %v478, %v537
      %v539 = vpop.f32.mrf.mxu0
      %v540 = vadd.f32 %v478, %v539
      %541 = vmatmul.bf16.gmra.mxu0 %v458
      %v542 = vpop.f32.mrf.mxu0
      %v543 = vadd.f32 %v478, %v542
      %v544 = vpop.f32.mrf.mxu0
      %v545 = vadd.f32 %v478, %v544
      %546 = vmatmul.bf16.gmra.mxu0 %v459
      %v547 = vpop.f32.mrf.mxu0
      %v548 = vadd.f32 %v478, %v547
      %v549 = vpop.f32.mrf.mxu0
      %v550 = vadd.f32 %v478, %v549
      %551 = vdwg.mxu0
      %v552 = vsub.f32 0.0, %v538
      %v553 = vsub.f32 0.0, %v540
      %v554 = vsub.f32 0.0, %v543
      %v555 = vsub.f32 0.0, %v545
      %v556 = vsub.f32 0.0, %v548
      %v557 = vsub.f32 0.0, %v550
      %v558 = vmul.f32 %v552, 1.442695
      %v559 = vpow.pop %v558
      %v560 = vmul.f32 %v553, 1.442695
      %v561 = vpow.pop %v560
      %v562 = vmul.f32 %v554, 1.442695
      %v563 = vpow.pop %v562
      %v564 = vmul.f32 %v555, 1.442695
      %v565 = vpow.pop %v564
      %v566 = vmul.f32 %v556, 1.442695
      %v567 = vpow.pop %v566
      %v568 = vmul.f32 %v557, 1.442695
      %v569 = vpow.pop %v568
      %v570 = vadd.f32 %v559, 1.0
      %v571 = vadd.f32 %v561, 1.0
      %v572 = vadd.f32 %v563, 1.0
      %v573 = vadd.f32 %v565, 1.0
      %v574 = vadd.f32 %v567, 1.0
      %v575 = vadd.f32 %v569, 1.0
      %v576 = vrcp.pop %v570
      %v577 = vrcp.pop %v571
      %v578 = vrcp.pop %v572
      %v579 = vrcp.pop %v573
      %v580 = vrcp.pop %v574
      %v581 = vrcp.pop %v575
      %v582 = vpack.c.bf16 %v576, %v576
      %v583 = vpack.c.bf16 %v577, %v577
      %v584 = vpack.c.bf16 %v578, %v578
      %v585 = vpack.c.bf16 %v579, %v579
      %v586 = vpack.c.bf16 %v580, %v580
      %v587 = vpack.c.bf16 %v581, %v581
      %588 = vst [vmem:[%s280] sm:$0xf] %v582
      %589 = vst [vmem:[%s280 + $0x4] sm:$0xf] %v583
      %590 = vst [vmem:[%s280 + $0x8] sm:$0xf] %v584
      %591 = vst [vmem:[%s280 + $0xc] sm:$0xf] %v585
      %592 = vst [vmem:[%s280 + $0x10] sm:$0xf] %v586
      %593 = vst [vmem:[%s280 + $0x14] sm:$0xf] %v587
      %s594 = smul.u32 6, %s18
      %p595 = scmp.lt.s32.totalorder %s594, 11
      %s596 = scalar_select %p595, %s594, 11
      %s597 = smul.addr %s596, 4
      %s598 = scalar_lea.vmem %s7, %s597
      // Predicated region
      $region49: #{mlp_forward.1} parent=47 // pred_check
        %p599 = pneg %p188
      $region50: #{mlp_forward.1} parent=47 // pred_check_branch
        %601 = sbr.rel (%p599) target = $region52
      $region51: #{mlp_forward.1} parent=47 // pred_region
        %s602 = smul.u32 6, %s18
      $region52: #{mlp_forward.1} parent=47 // pred_fallthru
        _
    $region48: #{mlp_forward.1} parent=5 // pred_fallthru
      _
    %p603 = scmp.le.s32.totalorder 2, %s13
    // Predicated region
    $region53: #{mlp_forward.1} parent=5 // pred_check
      %p604 = pneg %p603
    $region54: #{mlp_forward.1} parent=5 // pred_check_branch
      %606 = sbr.rel (%p604) target = $region56
    $region55: #{mlp_forward.1} parent=5 // pred_region
      %s607 = ssub.s32 %s13, 2
      // Predicated region
      $region57: #{mlp_forward.1} parent=55 // pred_check
        %p608 = pneg %p194
      $region58: #{mlp_forward.1} parent=55 // pred_check_branch
        %610 = sbr.rel (%p608) target = $region60
      $region59: #{mlp_forward.1} parent=55 // pred_region
        %s611 = smul.u32 6, %s19
        %p612 = scmp.lt.s32.totalorder %s611, 11
        %s613 = scalar_select %p612, %s611, 11
        %s614 = smul.addr %s613, 4
        %s615 = scalar_lea.vmem %s7, %s614
      $region60: #{mlp_forward.1} parent=55 // pred_fallthru
        _
    $region56: #{mlp_forward.1} parent=5 // pred_fallthru
      _
  $region6: #{mlp_forward.1} parent=0 // loop_footer
    %s17 = sadd.s32 1, %s13
  $region7: #{mlp_forward.1} parent=0 // loop_footer_branch
    %12 = sbr.rel target = $region3
  $region8: #{mlp_forward.1} parent=0 // loop_exit
    _

</llo_original>
